<compile_context>
chip_gen: v7x
topology: tpu7x:2x2x1
jax: 0.10.0
libtpu: 0.0.40
codegen_flags: <defaults>
</compile_context>

<pallas_src>
import jax
import jax.numpy as jnp
from jax.experimental import pallas as pl
from jax.experimental.pallas import tpu as pltpu


# ----------------------------- small helpers --------------------------------

def _sign(v):
    # torch.sign semantics (sign(0) == 0); compare + select on the VPU.
    one = jnp.ones_like(v)
    return jnp.where(v > 0, one, jnp.where(v < 0, -one, jnp.zeros_like(v)))


def _weight_scale(w2d):
    """Per-output-channel scale sw of myConv2d: mean(|(w - mean)/std|), ddof=1.

    Note: for C_in == 1 the ddof=1 std is NaN (matches torch's behavior).
    """
    c = w2d - jnp.mean(w2d, axis=1, keepdims=True)
    std = jnp.std(c, axis=1, keepdims=True, ddof=1)
    return jnp.mean(jnp.abs(c / std), axis=1)  # (C_out_half,)


def _binarize_1x1_weight(w):
    """Effective myConv2d weight for a 1x1 kernel: sign(w) * sw (reference path)."""
    co = w.shape[0]
    w2d = w.reshape(co, -1).astype(jnp.float32)
    return jnp.sign(w2d) * _weight_scale(w2d)[:, None]


def _tpu_info():
    try:
        return pltpu.get_tpu_info()
    except Exception:
        return None


def _vmem_capacity_bytes():
    info = _tpu_info()
    if info is not None:
        try:
            v = int(getattr(info, "vmem_capacity_bytes"))
            if v > 0:
                return v
        except Exception:
            pass
    return 64 * 1024 * 1024  # conservative default (v7x physical VMEM)


def _num_tensorcores():
    info = _tpu_info()
    if info is not None:
        for name in ("num_cores", "core_count", "num_tensorcores", "tensorcore_count"):
            try:
                v = int(getattr(info, name))
            except Exception:
                continue
            if v > 0:
                return v
    return 1


def _pick_row_block(R, per_row_bytes, out_itemsize, vmem_cap, num_tc):
    """Rows of (N*Ho) per grid step: sized by a live-byte budget, TC-aware."""
    budget = (6 if vmem_cap <= 64 * 1024 * 1024 else 8) * 1024 * 1024
    align = 8 if out_itemsize >= 4 else 16      # keep rb*Wo sublane-aligned
    rb = max(align, (budget // max(per_row_bytes, 1)) // align * align)
    if num_tc > 1:
        # Multi-TensorCore chips: make sure every core gets at least one step.
        per_core = -(-R // num_tc)
        per_core = -(-per_core // align) * align
        rb = min(rb, max(align, per_core))
    if rb >= R:
        return R                                 # single full-extent block
    return rb


# ------------------------------- kernels -------------------------------------

def _fr_kernel_kstack(x1_ref, x2_ref, wk_ref, th_ref, s2_ref, t2_ref, a_ref, o_ref):
    """bn1-threshold sign -> single K-stacked 1x1 conv matmul -> bn2 -> PReLU.

    x1_ref : (rb, Wo, 2*C_in) h-even rows, features = [w-even C_in | w-odd C_in]
    x2_ref : (rb, Wo, 2*C_in) h-odd rows, same feature layout
    wk_ref : (4*C_in, C_out)  bf16 block-diagonal sign weights
                              rows [0:C]   -> lanes [:Ch]  (path 1: h-even, w-even)
                              rows [3C:4C] -> lanes [Ch:]  (path 2: h-odd,  w-odd)
    th_ref : (1, 2*C_in)      bn1 threshold (-shift/scale), tiled over w-parity
    s2/t2/a: (1, C_out)       bn2 scale*sw, bn2 shift, PReLU slopes
    o_ref  : (rb*Wo, C_out)
    """
    rb, wo, c2 = x1_ref.shape
    th = th_ref[...]
    # bn1 + binary activation: sign(s1*x + t1) = sign(s1) * sign(x - th); the
    # sign(s1) factor lives in the weight rows, so this is one sub + one sign.
    b1 = _sign(x1_ref[...].astype(jnp.float32) - th).reshape(rb * wo, c2)
    b2 = _sign(x2_ref[...].astype(jnp.float32) - th).reshape(rb * wo, c2)
    # K-stack the two paths: the channel concat is realized inside one MXU
    # matmul (bf16 +-1 operands, f32 accumulation -> exact).
    bs = jnp.concatenate([b1, b2], axis=-1).astype(jnp.bfloat16)
    acc = jnp.dot(bs, wk_ref[...], preferred_element_type=jnp.float32)
    # bn2 (with sw folded into the scale) + PReLU epilogue, single store.
    y = acc * s2_ref[...] + t2_ref[...]
    o_ref[...] = jnp.where(y > 0, y, a_ref[...] * y).astype(o_ref.dtype)


def _fr_kernel_split(x1_ref, x2_ref, w1_ref, w2_ref, th_ref, s2_ref, t2_ref, a_ref, o_ref):
    """Large-channel variant: two half-width matmuls into disjoint lane blocks.

    x1_ref : (rb, Wo, C_in)  h-even rows, w-even features (narrow DMA block)
    x2_ref : (rb, Wo, C_in)  h-odd rows,  w-odd  features (narrow DMA block)
    w1/w2  : (C_in, C_out//2) bf16 sign weights (sign(bn1 scale) folded in)
    """
    rb, wo, c = x1_ref.shape
    th = th_ref[...]
    b1 = _sign(x1_ref[...].astype(jnp.float32) - th).reshape(rb * wo, c).astype(jnp.bfloat16)
    b2 = _sign(x2_ref[...].astype(jnp.float32) - th).reshape(rb * wo, c).astype(jnp.bfloat16)
    acc = jnp.concatenate(
        [jnp.dot(b1, w1_ref[...], preferred_element_type=jnp.float32),
         jnp.dot(b2, w2_ref[...], preferred_element_type=jnp.float32)],
        axis=-1)
    y = acc * s2_ref[...] + t2_ref[...]
    o_ref[...] = jnp.where(y > 0, y, a_ref[...] * y).astype(o_ref.dtype)


# ------------------------------- wrappers -------------------------------------

def factorized_reduce_nhwc(x_nhwc, params, *, eps=1e-5):
    """FactorizedReduce forward (eval-mode BatchNorm), NHWC in -> NHWC out."""
    N, H, W, C_in = x_nhwc.shape
    assert H % 2 == 0 and W % 2 == 0, "FactorizedReduce expects even H, W"
    Ho, Wo = H // 2, W // 2
    R = N * Ho

    w1_raw = params["w1"].reshape(params["w1"].shape[0], -1).astype(jnp.float32)
    w2_raw = params["w2"].reshape(params["w2"].shape[0], -1).astype(jnp.float32)
    Ch = w1_raw.shape[0]
    C_out = 2 * Ch

    # Fold eval-mode BatchNorms to per-channel scale/shift.
    # TODO(synk): training-mode BatchNorm (batch statistics + running-stat
    # updates) is not implemented; this is the eval-mode forward pass.
    g1, be1, m1, v1 = [p.astype(jnp.float32) for p in params["bn1"]]
    s1 = g1 / jnp.sqrt(v1 + eps)
    t1 = be1 - m1 * s1
    g2, be2, m2, v2 = [p.astype(jnp.float32) for p in params["bn2"]]
    s2 = g2 / jnp.sqrt(v2 + eps)
    t2 = be2 - m2 * s2
    alpha = params["prelu"].astype(jnp.float32)

    # bn1 + sign fold: sign(s1*x + t1) == sign(s1) * sign(x - (-t1/s1)); the
    # sign(s1) factor moves into the weight rows, the threshold into the kernel
    # prologue. Guard the pathological gamma == 0 case.
    s1_safe = jnp.where(s1 == 0, jnp.float32(1e-30), s1)
    th = (-t1 / s1_safe).reshape(1, C_in)
    sgn1 = jnp.sign(s1_safe)                                   # exactly +-1

    # Binary weights: pure sign(w) (exact in bf16) with sign(s1) folded per
    # input channel; the per-output-channel scale sw moves into the bn2 scale.
    w1t = (jnp.sign(w1_raw) * sgn1[None, :]).T                 # (C_in, Ch)
    w2t = (jnp.sign(w2_raw) * sgn1[None, :]).T
    sw = jnp.concatenate([_weight_scale(w1_raw), _weight_scale(w2_raw)])
    s2_eff = (s2 * sw).reshape(1, C_out)
    t2_r = t2.reshape(1, C_out)
    a_r = alpha.reshape(1, C_out)

    # Free view: (N, H, W, C) -> (N*Ho, 2, Wo, 2*C_in). The H-parity dim is
    # picked by the block DMA; the W-parity rides along on the lane axis so the
    # DMA reads long contiguous spans (no gather materialization).
    x_r = x_nhwc.reshape(R, 2, Wo, 2 * C_in)

    out_dtype = x_nhwc.dtype
    in_item = x_nhwc.dtype.itemsize
    out_item = jnp.dtype(out_dtype).itemsize
    vmem_cap = _vmem_capacity_bytes()
    num_tc = _num_tensorcores()
    vmem_limit = int(min(64 * 1024 * 1024, max(32 * 1024 * 1024, (vmem_cap * 3) // 4)))

    # Large C_out with lane-aligned C_in: two half-width matmuls on narrow DMA
    # blocks. Otherwise: one K-stacked matmul (zero-MACs are free at small K).
    # TODO(synk): int8 MXU path on v5e / fp8 on v7x not implemented (bf16 used
    # everywhere; +-1 operands are exact in bf16 with f32 accumulation).
    use_split = (C_out > 128) and (C_in % 128 == 0)

    if use_split:
        per_row = Wo * (2 * C_in * in_item + C_out * out_item) * 2   # double-buffered
        rb = _pick_row_block(R, per_row, out_item, vmem_cap, num_tc)
        kernel = _fr_kernel_split
        in_specs = [
            pl.BlockSpec((rb, pl.Squeezed(), Wo, C_in), lambda i: (i, 0, 0, 0)),  # h-even,w-even
            pl.BlockSpec((rb, pl.Squeezed(), Wo, C_in), lambda i: (i, 1, 0, 1)),  # h-odd, w-odd
            pl.BlockSpec((C_in, Ch), lambda i: (0, 0)),
            pl.BlockSpec((C_in, Ch), lambda i: (0, 0)),
            pl.BlockSpec((1, C_in), lambda i: (0, 0)),
            pl.BlockSpec((1, C_out), lambda i: (0, 0)),
            pl.BlockSpec((1, C_out), lambda i: (0, 0)),
            pl.BlockSpec((1, C_out), lambda i: (0, 0)),
        ]
        operands = (x_r, x_r, w1t.astype(jnp.bfloat16), w2t.astype(jnp.bfloat16),
                    th, s2_eff, t2_r, a_r)
    else:
        K = 4 * C_in
        wk = jnp.zeros((K, C_out), jnp.float32)
        wk = wk.at[:C_in, :Ch].set(w1t)              # path 1 -> lanes [:Ch]
        wk = wk.at[3 * C_in:, Ch:].set(w2t)          # path 2 -> lanes [Ch:]
        wk = wk.astype(jnp.bfloat16)
        th2 = jnp.concatenate([th, th], axis=-1)     # (1, 2*C_in)
        per_row = Wo * (2 * (2 * C_in) * in_item + C_out * out_item) * 2
        rb = _pick_row_block(R, per_row, out_item, vmem_cap, num_tc)
        kernel = _fr_kernel_kstack
        in_specs = [
            pl.BlockSpec((rb, pl.Squeezed(), Wo, 2 * C_in), lambda i: (i, 0, 0, 0)),  # h-even rows
            pl.BlockSpec((rb, pl.Squeezed(), Wo, 2 * C_in), lambda i: (i, 1, 0, 0)),  # h-odd rows
            pl.BlockSpec((K, C_out), lambda i: (0, 0)),
            pl.BlockSpec((1, 2 * C_in), lambda i: (0, 0)),
            pl.BlockSpec((1, C_out), lambda i: (0, 0)),
            pl.BlockSpec((1, C_out), lambda i: (0, 0)),
            pl.BlockSpec((1, C_out), lambda i: (0, 0)),
        ]
        operands = (x_r, x_r, wk, th2, s2_eff, t2_r, a_r)

    # Output stays flat as (R*Wo, C_out): sublane-dense stores and a free
    # reshape to NHWC afterwards. (For C_out < 128 the lanes are partially
    # masked; folding Wo onto the lane axis would need an in-kernel relayout.)
    # The grid uses cdiv; OOB rows of a trailing partial block are dropped by
    # Pallas' masked writeback (the demo shapes divide exactly).
    out2d = pl.pallas_call(
        kernel,
        out_shape=jax.ShapeDtypeStruct((R * Wo, C_out), out_dtype),
        grid=(pl.cdiv(R, rb),),
        in_specs=in_specs,
        out_specs=pl.BlockSpec((rb * Wo, C_out), lambda i: (i, 0)),
        compiler_params=pltpu.CompilerParams(
            dimension_semantics=("parallel",),
            vmem_limit_bytes=vmem_limit,
        ),
    )(*operands)

    return out2d.reshape(N, Ho, Wo, C_out)


def factorized_reduce(x, params, *, eps=1e-5):
    """FactorizedReduce forward for NCHW input, returns NCHW.

    The NCHW<->NHWC transposes are XLA layout plumbing around the fused kernel;
    use factorized_reduce_nhwc directly in an NHWC network to avoid them.
    """
    x_nhwc = jnp.transpose(x, (0, 2, 3, 1))            # native dtype, no f32 upcast
    y = factorized_reduce_nhwc(x_nhwc, params, eps=eps)
    return jnp.transpose(y, (0, 3, 1, 2))


def factorized_reduce_reference(x, params, *, eps=1e-5):
    """Pure-JAX (no Pallas) reference of the same forward pass."""
    x = x.astype(jnp.float32)
    g1, be1, m1, v1 = params["bn1"]
    s1 = g1 / jnp.sqrt(v1 + eps)
    t1 = be1 - m1 * s1
    xb = jnp.sign(x * s1[None, :, None, None] + t1[None, :, None, None])
    w1 = _binarize_1x1_weight(params["w1"])
    w2 = _binarize_1x1_weight(params["w2"])
    x1 = xb[:, :, 0::2, 0::2]
    x2 = xb[:, :, 1::2, 1::2]
    hp = jax.lax.Precision.HIGHEST
    y1 = jnp.einsum("nchw,oc->nohw", x1, w1, precision=hp)
    y2 = jnp.einsum("nchw,oc->nohw", x2, w2, precision=hp)
    y = jnp.concatenate([y1, y2], axis=1)
    g2, be2, m2, v2 = params["bn2"]
    s2 = g2 / jnp.sqrt(v2 + eps)
    t2 = be2 - m2 * s2
    y = y * s2[None, :, None, None] + t2[None, :, None, None]
    a = params["prelu"]
    return jnp.where(y > 0, y, a[None, :, None, None] * y)


# --------------------------------- demo ---------------------------------------

def _make_params(key, C_in, C_out):
    Ch = C_out // 2
    ks = jax.random.split(key, 10)
    return {
        "w1": jax.random.normal(ks[0], (Ch, C_in, 1, 1), dtype=jnp.float32),
        "w2": jax.random.normal(ks[1], (Ch, C_in, 1, 1), dtype=jnp.float32),
        "bn1": (
            1.0 + 0.1 * jax.random.normal(ks[2], (C_in,), dtype=jnp.float32),
            0.1 * jax.random.normal(ks[3], (C_in,), dtype=jnp.float32),
            0.1 * jax.random.normal(ks[4], (C_in,), dtype=jnp.float32),
            jax.random.uniform(ks[5], (C_in,), minval=0.5, maxval=1.5, dtype=jnp.float32),
        ),
        "bn2": (
            1.0 + 0.1 * jax.random.normal(ks[6], (C_out,), dtype=jnp.float32),
            0.1 * jax.random.normal(ks[7], (C_out,), dtype=jnp.float32),
            0.1 * jax.random.normal(ks[8], (C_out,), dtype=jnp.float32),
            jax.random.uniform(ks[9], (C_out,), minval=0.5, maxval=1.5, dtype=jnp.float32),
        ),
        "prelu": jnp.full((C_out,), 0.25, dtype=jnp.float32),
    }


if __name__ == "__main__":
    fr = jax.jit(factorized_reduce)
    k_small, k_wide = jax.random.split(jax.random.PRNGKey(0))

    # Case 1 (module-sized): small channels -> single K-stacked matmul path.
    kx, kp = jax.random.split(k_small)
    N, C_in, H, W, C_out = 2, 4, 16, 16, 4
    x = jax.random.normal(kx, (N, C_in, H, W), dtype=jnp.float32)
    params = _make_params(kp, C_in, C_out)
    y = jax.block_until_ready(fr(x, params))
    assert y.shape == (N, C_out, H // 2, W // 2), y.shape
    assert y.dtype == x.dtype, y.dtype
    y_ref = jax.block_until_ready(factorized_reduce_reference(x, params))
    err = float(jnp.max(jnp.abs(y - y_ref.astype(y.dtype))))
    assert err < 5e-2, f"kstack path: max abs error vs reference = {err}"

    # Case 2: wide channels -> two half-width matmuls on narrow DMA blocks.
    kx2, kp2 = jax.random.split(k_wide)
    N2, C_in2, H2, W2, C_out2 = 1, 128, 16, 16, 256
    x2 = jax.random.normal(kx2, (N2, C_in2, H2, W2), dtype=jnp.float32)
    params2 = _make_params(kp2, C_in2, C_out2)
    y2 = jax.block_until_ready(fr(x2, params2))
    assert y2.shape == (N2, C_out2, H2 // 2, W2 // 2), y2.shape
    y2_ref = jax.block_until_ready(factorized_reduce_reference(x2, params2))
    err2 = float(jnp.max(jnp.abs(y2 - y2_ref.astype(y2.dtype))))
    assert err2 < 5e-2, f"split path: max abs error vs reference = {err2}"

    print("KERNEL_OK")
</pallas_src>

<mosaic_0001>
module attributes {stable_mosaic.version = 11 : i64} {
  func.func @_fr_kernel_kstack(%arg0: i32, %arg1: memref<16x1x8x8xf32, #tpu.memory_space<vmem>>, %arg2: memref<16x1x8x8xf32, #tpu.memory_space<vmem>>, %arg3: memref<16x4xbf16, #tpu.memory_space<vmem>>, %arg4: memref<1x8xf32, #tpu.memory_space<vmem>>, %arg5: memref<1x4xf32, #tpu.memory_space<vmem>>, %arg6: memref<1x4xf32, #tpu.memory_space<vmem>>, %arg7: memref<1x4xf32, #tpu.memory_space<vmem>>, %arg8: memref<128x4xf32, #tpu.memory_space<vmem>>) attributes {dimension_semantics = [#tpu.dimension_semantics<parallel>], iteration_bounds = array<i64: 1>, scalar_prefetch = 0 : i64, scratch_operands = 0 : i64, tpu.core_type = #tpu.core_type<tc>, window_params = [{transform_indices = @transform_0, window_bounds = array<i64: 16, 1, 8, 8>}, {transform_indices = @transform_1, window_bounds = array<i64: 16, 1, 8, 8>}, {pipeline_mode = #tpu.pipeline_mode<synchronous>, transform_indices = @transform_2, window_bounds = array<i64: 16, 4>}, {pipeline_mode = #tpu.pipeline_mode<synchronous>, transform_indices = @transform_3, window_bounds = array<i64: 1, 8>}, {pipeline_mode = #tpu.pipeline_mode<synchronous>, transform_indices = @transform_4, window_bounds = array<i64: 1, 4>}, {pipeline_mode = #tpu.pipeline_mode<synchronous>, transform_indices = @transform_5, window_bounds = array<i64: 1, 4>}, {pipeline_mode = #tpu.pipeline_mode<synchronous>, transform_indices = @transform_6, window_bounds = array<i64: 1, 4>}, {transform_indices = @transform_7, window_bounds = array<i64: 128, 4>}]} {
    %c0 = arith.constant 0 : index
    %c0_0 = arith.constant 0 : index
    %0 = vector.load %arg4[%c0, %c0_0] : memref<1x8xf32, #tpu.memory_space<vmem>>, vector<1x8xf32>
    %c0_1 = arith.constant 0 : index
    %c0_2 = arith.constant 0 : index
    %c0_3 = arith.constant 0 : index
    %c0_4 = arith.constant 0 : index
    %1 = vector.load %arg1[%c0_1, %c0_2, %c0_3, %c0_4] : memref<16x1x8x8xf32, #tpu.memory_space<vmem>>, vector<16x1x8x8xf32>
    %2 = vector.shape_cast %1 : vector<16x1x8x8xf32> to vector<16x8x8xf32>
    %3 = vector.shape_cast %0 : vector<1x8xf32> to vector<1x1x8xf32>
    %4 = vector.broadcast %3 : vector<1x1x8xf32> to vector<16x8x8xf32>
    %5 = arith.subf %2, %4 : vector<16x8x8xf32>
    %cst = arith.constant 1.000000e+00 : f32
    %6 = vector.broadcast %cst : f32 to vector<16x8x8xf32>
    %cst_5 = arith.constant 0.000000e+00 : f32
    %7 = vector.broadcast %cst_5 : f32 to vector<16x8x8xf32>
    %8 = arith.cmpf ogt, %5, %7 : vector<16x8x8xf32>
    %cst_6 = arith.constant 0.000000e+00 : f32
    %9 = vector.broadcast %cst_6 : f32 to vector<16x8x8xf32>
    %10 = arith.cmpf olt, %5, %9 : vector<16x8x8xf32>
    %cst_7 = arith.constant 0.000000e+00 : f32
    %11 = vector.broadcast %cst_7 : f32 to vector<16x8x8xf32>
    %12 = arith.subf %11, %6 : vector<16x8x8xf32>
    %cst_8 = arith.constant 0.000000e+00 : f32
    %13 = vector.broadcast %cst_8 : f32 to vector<16x8x8xf32>
    %14 = arith.select %10, %12, %13 : vector<16x8x8xi1>, vector<16x8x8xf32>
    %15 = arith.select %8, %6, %14 : vector<16x8x8xi1>, vector<16x8x8xf32>
    %16 = vector.shape_cast %15 : vector<16x8x8xf32> to vector<128x8xf32>
    %c0_9 = arith.constant 0 : index
    %c0_10 = arith.constant 0 : index
    %c0_11 = arith.constant 0 : index
    %c0_12 = arith.constant 0 : index
    %17 = vector.load %arg2[%c0_9, %c0_10, %c0_11, %c0_12] : memref<16x1x8x8xf32, #tpu.memory_space<vmem>>, vector<16x1x8x8xf32>
    %18 = vector.shape_cast %17 : vector<16x1x8x8xf32> to vector<16x8x8xf32>
    %19 = vector.shape_cast %0 : vector<1x8xf32> to vector<1x1x8xf32>
    %20 = vector.broadcast %19 : vector<1x1x8xf32> to vector<16x8x8xf32>
    %21 = arith.subf %18, %20 : vector<16x8x8xf32>
    %cst_13 = arith.constant 1.000000e+00 : f32
    %22 = vector.broadcast %cst_13 : f32 to vector<16x8x8xf32>
    %cst_14 = arith.constant 0.000000e+00 : f32
    %23 = vector.broadcast %cst_14 : f32 to vector<16x8x8xf32>
    %24 = arith.cmpf ogt, %21, %23 : vector<16x8x8xf32>
    %cst_15 = arith.constant 0.000000e+00 : f32
    %25 = vector.broadcast %cst_15 : f32 to vector<16x8x8xf32>
    %26 = arith.cmpf olt, %21, %25 : vector<16x8x8xf32>
    %cst_16 = arith.constant 0.000000e+00 : f32
    %27 = vector.broadcast %cst_16 : f32 to vector<16x8x8xf32>
    %28 = arith.subf %27, %22 : vector<16x8x8xf32>
    %cst_17 = arith.constant 0.000000e+00 : f32
    %29 = vector.broadcast %cst_17 : f32 to vector<16x8x8xf32>
    %30 = arith.select %26, %28, %29 : vector<16x8x8xi1>, vector<16x8x8xf32>
    %31 = arith.select %24, %22, %30 : vector<16x8x8xi1>, vector<16x8x8xf32>
    %32 = vector.shape_cast %31 : vector<16x8x8xf32> to vector<128x8xf32>
    %33 = tpu.concatenate %16, %32 in 1 : vector<128x8xf32>, vector<128x8xf32> -> vector<128x16xf32>
    %34 = arith.truncf %33 : vector<128x16xf32> to vector<128x16xbf16>
    %c0_18 = arith.constant 0 : index
    %c0_19 = arith.constant 0 : index
    %35 = vector.load %arg3[%c0_18, %c0_19] : memref<16x4xbf16, #tpu.memory_space<vmem>>, vector<16x4xbf16>
    %cst_20 = arith.constant dense<0.000000e+00> : vector<128x4xf32>
    %36 = tpu.matmul %34, %35, %cst_20 {dimension_numbers = #tpu.dot_dimension_numbers<[1], [0], [0], [1], [0, 0, 1, 1], [], []>} : vector<128x16xbf16>, vector<16x4xbf16>, vector<128x4xf32> -> vector<128x4xf32>
    %c0_21 = arith.constant 0 : index
    %c0_22 = arith.constant 0 : index
    %37 = vector.load %arg5[%c0_21, %c0_22] : memref<1x4xf32, #tpu.memory_space<vmem>>, vector<1x4xf32>
    %38 = vector.broadcast %37 : vector<1x4xf32> to vector<128x4xf32>
    %39 = arith.mulf %36, %38 : vector<128x4xf32>
    %c0_23 = arith.constant 0 : index
    %c0_24 = arith.constant 0 : index
    %40 = vector.load %arg6[%c0_23, %c0_24] : memref<1x4xf32, #tpu.memory_space<vmem>>, vector<1x4xf32>
    %41 = vector.broadcast %40 : vector<1x4xf32> to vector<128x4xf32>
    %42 = arith.addf %39, %41 : vector<128x4xf32>
    %cst_25 = arith.constant 0.000000e+00 : f32
    %43 = vector.broadcast %cst_25 : f32 to vector<128x4xf32>
    %44 = arith.cmpf ogt, %42, %43 : vector<128x4xf32>
    %c0_26 = arith.constant 0 : index
    %c0_27 = arith.constant 0 : index
    %45 = vector.load %arg7[%c0_26, %c0_27] : memref<1x4xf32, #tpu.memory_space<vmem>>, vector<1x4xf32>
    %46 = vector.broadcast %45 : vector<1x4xf32> to vector<128x4xf32>
    %47 = arith.mulf %46, %42 : vector<128x4xf32>
    %48 = arith.select %44, %42, %47 : vector<128x4xi1>, vector<128x4xf32>
    %c0_28 = arith.constant 0 : index
    %c0_29 = arith.constant 0 : index
    %49 = vector.load %arg8[%c0_28, %c0_29] : memref<128x4xf32, #tpu.memory_space<vmem>>, vector<128x4xf32>
    tpu.vector_store %arg8[%c0_28, %c0_29], %48 {strides = array<i32>} : memref<128x4xf32, #tpu.memory_space<vmem>>, vector<128x4xf32>,
    return
  }
  func.func @transform_0(%arg0: i32) -> (i32, i32, i32, i32) {
    %c0_i32 = arith.constant 0 : i32
    %c0_i32_0 = arith.constant 0 : i32
    %c0_i32_1 = arith.constant 0 : i32
    %c0_i32_2 = arith.constant 0 : i32
    return %arg0, %c0_i32, %c0_i32_0, %c0_i32_1 : i32, i32, i32, i32
  }
  func.func @transform_1(%arg0: i32) -> (i32, i32, i32, i32) {
    %c1_i32 = arith.constant 1 : i32
    %c0_i32 = arith.constant 0 : i32
    %c0_i32_0 = arith.constant 0 : i32
    %c0_i32_1 = arith.constant 0 : i32
    return %arg0, %c1_i32, %c0_i32, %c0_i32_0 : i32, i32, i32, i32
  }
  func.func @transform_2(%arg0: i32) -> (i32, i32) {
    %c0_i32 = arith.constant 0 : i32
    %c0_i32_0 = arith.constant 0 : i32
    %c0_i32_1 = arith.constant 0 : i32
    return %c0_i32, %c0_i32_0 : i32, i32
  }
  func.func @transform_3(%arg0: i32) -> (i32, i32) {
    %c0_i32 = arith.constant 0 : i32
    %c0_i32_0 = arith.constant 0 : i32
    %c0_i32_1 = arith.constant 0 : i32
    return %c0_i32, %c0_i32_0 : i32, i32
  }
  func.func @transform_4(%arg0: i32) -> (i32, i32) {
    %c0_i32 = arith.constant 0 : i32
    %c0_i32_0 = arith.constant 0 : i32
    %c0_i32_1 = arith.constant 0 : i32
    return %c0_i32, %c0_i32_0 : i32, i32
  }
  func.func @transform_5(%arg0: i32) -> (i32, i32) {
    %c0_i32 = arith.constant 0 : i32
    %c0_i32_0 = arith.constant 0 : i32
    %c0_i32_1 = arith.constant 0 : i32
    return %c0_i32, %c0_i32_0 : i32, i32
  }
  func.func @transform_6(%arg0: i32) -> (i32, i32) {
    %c0_i32 = arith.constant 0 : i32
    %c0_i32_0 = arith.constant 0 : i32
    %c0_i32_1 = arith.constant 0 : i32
    return %c0_i32, %c0_i32_0 : i32, i32
  }
  func.func @transform_7(%arg0: i32) -> (i32, i32) {
    %c0_i32 = arith.constant 0 : i32
    %c0_i32_0 = arith.constant 0 : i32
    return %arg0, %c0_i32 : i32, i32
  }
}

</mosaic_0001>

<llo_original>
// kernel: factorized_reduce.1
$region0: #{factorized_reduce.1}
  #allocation0 [shape = 'u32[]', space=smem, size = 0x4, offset = 0x4, fixed_abs, tag = 'smem constant byte address 0x4 - core index']
  #allocation1 [shape = 'u32[144,128]{1,0:T(1,128)}', space=vmem, size = 0x12000, scoped, tag = 'internal scratch']
  %s0 = inlined_call_operand.vmem [shape: f32[16,2,8,8], index: 0, kind: input, shape index: {}, may-alias: {0,1}]
  %s1 = inlined_call_operand.vmem [shape: f32[16,2,8,8], index: 1, kind: input, shape index: {}, may-alias: {0,1}]
  %s2 = inlined_call_operand.vmem [shape: bf16[16,4], index: 2, kind: input, shape index: {}]
  %s3 = inlined_call_operand.vmem [shape: f32[1,8], index: 3, kind: input, shape index: {}]
  %s4 = inlined_call_operand.vmem [shape: f32[1,4], index: 4, kind: input, shape index: {}]
  %s5 = inlined_call_operand.vmem [shape: f32[1,4], index: 5, kind: input, shape index: {}]
  %s6 = inlined_call_operand.vmem [shape: f32[1,4], index: 6, kind: input, shape index: {}]
  %s7 = inlined_call_operand.vmem [shape: f32[128,4], index: 7, kind: output, shape index: {}]
  %s8 = sld [smem:[#allocation0]]
  $region114: #{factorized_reduce.1} parent=0
    _
  %s10 = ssub.s32 1, %s8
  %s11 = scalar_select 0, %s10, %s8
  $region1: #{factorized_reduce.1} parent=0
    #allocation2 [shape = 'u8[65536]{0}', space=vmem, size = 0x10000, scoped, tag = 'input window, operand 0, single buffered']
    #allocation3 [shape = 'u8[65536]{0}', space=vmem, size = 0x10000, scoped, tag = 'input window, operand 1, single buffered']
    // Predicated region
    $region2: #{factorized_reduce.1} parent=1 // pred_check
      _
    $region3: #{factorized_reduce.1} parent=1 // pred_check_branch
      %13 = sbr.rel (0) target = $region5
    $region4: #{factorized_reduce.1} parent=1 // pred_region
      // Predicated region
      $region6: #{factorized_reduce.1} parent=4 // pred_check
        _
      $region7: #{factorized_reduce.1} parent=4 // pred_check_branch
        %15 = sbr.rel (0) target = $region9
      $region8: #{factorized_reduce.1} parent=4 // pred_region
        // Predicated region
        $region10: #{factorized_reduce.1} parent=8 // pred_check
          _
        $region11: #{factorized_reduce.1} parent=8 // pred_check_branch
          %17 = sbr.rel (0) target = $region13
        $region12: #{factorized_reduce.1} parent=8 // pred_region
          // Predicated region
          $region25: #{factorized_reduce.1} parent=12 // pred_check
            _
          $region26: #{factorized_reduce.1} parent=12 // pred_check_branch
            %62 = sbr.rel (0) target = $region28
          $region27: #{factorized_reduce.1} parent=12 // pred_region
            loop: start=0, step=1, limit=1
            $region29: #{factorized_reduce.1} parent=27 // loop_pre_header
              _
            $region30: #{factorized_reduce.1} parent=27 // loop_header
              %s64 = sphi 0, %s68
              %p65 = scmp.ge.s32.totalorder %s64, 1
              %s69 = sphi %s0, %s0
              %s70 = sphi [#allocation2], [#allocation2]
            $region31: #{factorized_reduce.1} parent=27 // loop_header_branch
              %67 = sbr.rel (%p65) target = $region35
            $region32: #{factorized_reduce.1} parent=27 // loop_body
              %v71 = vld [vmem:[%s69] sm:$0xff]
              %72 = vst [vmem:[%s70] sm:$0xff] %v71
              %v73 = vld [vmem:[%s69 + $0x10] sm:$0xff]
              %74 = vst [vmem:[%s70 + $0x8] sm:$0xff] %v73
              %v75 = vld [vmem:[%s69 + $0x20] sm:$0xff]
              %76 = vst [vmem:[%s70 + $0x10] sm:$0xff] %v75
              %v77 = vld [vmem:[%s69 + $0x30] sm:$0xff]
              %78 = vst [vmem:[%s70 + $0x18] sm:$0xff] %v77
              %v79 = vld [vmem:[%s69 + $0x40] sm:$0xff]
              %80 = vst [vmem:[%s70 + $0x20] sm:$0xff] %v79
              %v81 = vld [vmem:[%s69 + $0x50] sm:$0xff]
              %82 = vst [vmem:[%s70 + $0x28] sm:$0xff] %v81
              %v83 = vld [vmem:[%s69 + $0x60] sm:$0xff]
              %84 = vst [vmem:[%s70 + $0x30] sm:$0xff] %v83
              %v85 = vld [vmem:[%s69 + $0x70] sm:$0xff]
              %86 = vst [vmem:[%s70 + $0x38] sm:$0xff] %v85
              %v87 = vld [vmem:[%s69 + $0x80] sm:$0xff]
              %88 = vst [vmem:[%s70 + $0x40] sm:$0xff] %v87
              %v89 = vld [vmem:[%s69 + $0x90] sm:$0xff]
              %90 = vst [vmem:[%s70 + $0x48] sm:$0xff] %v89
              %v91 = vld [vmem:[%s69 + $0xa0] sm:$0xff]
              %92 = vst [vmem:[%s70 + $0x50] sm:$0xff] %v91
              %v93 = vld [vmem:[%s69 + $0xb0] sm:$0xff]
              %94 = vst [vmem:[%s70 + $0x58] sm:$0xff] %v93
              %v95 = vld [vmem:[%s69 + $0xc0] sm:$0xff]
              %96 = vst [vmem:[%s70 + $0x60] sm:$0xff] %v95
              %v97 = vld [vmem:[%s69 + $0xd0] sm:$0xff]
              %98 = vst [vmem:[%s70 + $0x68] sm:$0xff] %v97
              %v99 = vld [vmem:[%s69 + $0xe0] sm:$0xff]
              %100 = vst [vmem:[%s70 + $0x70] sm:$0xff] %v99
              %v101 = vld [vmem:[%s69 + $0xf0] sm:$0xff]
              %102 = vst [vmem:[%s70 + $0x78] sm:$0xff] %v101
            $region33: #{factorized_reduce.1} parent=27 // loop_footer
              %s68 = sadd.s32 1, %s64
            $region34: #{factorized_reduce.1} parent=27 // loop_footer_branch
              %63 = sbr.rel target = $region30
            $region35: #{factorized_reduce.1} parent=27 // loop_exit
              _
          $region28: #{factorized_reduce.1} parent=12 // pred_fallthru
            _
          // Predicated region
          $region36: #{factorized_reduce.1} parent=12 // pred_check
            _
          $region37: #{factorized_reduce.1} parent=12 // pred_check_branch
            %104 = sbr.rel target = $region39
          $region38: #{factorized_reduce.1} parent=12 // pred_region
            _
          $region39: #{factorized_reduce.1} parent=12 // pred_fallthru
            _
        $region13: #{factorized_reduce.1} parent=8 // pred_fallthru
          _
        // Predicated region
        $region14: #{factorized_reduce.1} parent=8 // pred_check
          _
        $region15: #{factorized_reduce.1} parent=8 // pred_check_branch
          %19 = sbr.rel target = $region17
        $region16: #{factorized_reduce.1} parent=8 // pred_region
          loop: start=0, step=1, limit=1
          $region18: #{factorized_reduce.1} parent=16 // loop_pre_header
            _
          $region19: #{factorized_reduce.1} parent=16 // loop_header
            %s22 = sphi 0, %s26
            %p23 = scmp.ge.s32.totalorder %s22, 1
            %s27 = sphi %s0, %s0
            %s28 = sphi [#allocation2], [#allocation2]
          $region20: #{factorized_reduce.1} parent=16 // loop_header_branch
            %25 = sbr.rel (%p23) target = $region24
          $region21: #{factorized_reduce.1} parent=16 // loop_body
            %v29 = vld [vmem:[%s27] sm:$0xff]
            %30 = vst [vmem:[%s28] sm:$0xff] %v29
            %v31 = vld [vmem:[%s27 + $0x10] sm:$0xff]
            %32 = vst [vmem:[%s28 + $0x8] sm:$0xff] %v31
            %v33 = vld [vmem:[%s27 + $0x20] sm:$0xff]
            %34 = vst [vmem:[%s28 + $0x10] sm:$0xff] %v33
            %v35 = vld [vmem:[%s27 + $0x30] sm:$0xff]
            %36 = vst [vmem:[%s28 + $0x18] sm:$0xff] %v35
            %v37 = vld [vmem:[%s27 + $0x40] sm:$0xff]
            %38 = vst [vmem:[%s28 + $0x20] sm:$0xff] %v37
            %v39 = vld [vmem:[%s27 + $0x50] sm:$0xff]
            %40 = vst [vmem:[%s28 + $0x28] sm:$0xff] %v39
            %v41 = vld [vmem:[%s27 + $0x60] sm:$0xff]
            %42 = vst [vmem:[%s28 + $0x30] sm:$0xff] %v41
            %v43 = vld [vmem:[%s27 + $0x70] sm:$0xff]
            %44 = vst [vmem:[%s28 + $0x38] sm:$0xff] %v43
            %v45 = vld [vmem:[%s27 + $0x80] sm:$0xff]
            %46 = vst [vmem:[%s28 + $0x40] sm:$0xff] %v45
            %v47 = vld [vmem:[%s27 + $0x90] sm:$0xff]
            %48 = vst [vmem:[%s28 + $0x48] sm:$0xff] %v47
            %v49 = vld [vmem:[%s27 + $0xa0] sm:$0xff]
            %50 = vst [vmem:[%s28 + $0x50] sm:$0xff] %v49
            %v51 = vld [vmem:[%s27 + $0xb0] sm:$0xff]
            %52 = vst [vmem:[%s28 + $0x58] sm:$0xff] %v51
            %v53 = vld [vmem:[%s27 + $0xc0] sm:$0xff]
            %54 = vst [vmem:[%s28 + $0x60] sm:$0xff] %v53
            %v55 = vld [vmem:[%s27 + $0xd0] sm:$0xff]
            %56 = vst [vmem:[%s28 + $0x68] sm:$0xff] %v55
            %v57 = vld [vmem:[%s27 + $0xe0] sm:$0xff]
            %58 = vst [vmem:[%s28 + $0x70] sm:$0xff] %v57
            %v59 = vld [vmem:[%s27 + $0xf0] sm:$0xff]
            %60 = vst [vmem:[%s28 + $0x78] sm:$0xff] %v59
          $region22: #{factorized_reduce.1} parent=16 // loop_footer
            %s26 = sadd.s32 1, %s22
          $region23: #{factorized_reduce.1} parent=16 // loop_footer_branch
            %21 = sbr.rel target = $region19
          $region24: #{factorized_reduce.1} parent=16 // loop_exit
            _
        $region17: #{factorized_reduce.1} parent=8 // pred_fallthru
          _
      $region9: #{factorized_reduce.1} parent=4 // pred_fallthru
        _
      %105 = vnop
    $region5: #{factorized_reduce.1} parent=1 // pred_fallthru
      _
    // Predicated region
    $region40: #{factorized_reduce.1} parent=1 // pred_check
      _
    $region41: #{factorized_reduce.1} parent=1 // pred_check_branch
      %107 = sbr.rel (0) target = $region43
    $region42: #{factorized_reduce.1} parent=1 // pred_region
      %s108 = scalar_lea.vmem %s1, 8
      // Predicated region
      $region44: #{factorized_reduce.1} parent=42 // pred_check
        _
      $region45: #{factorized_reduce.1} parent=42 // pred_check_branch
        %110 = sbr.rel (0) target = $region47
      $region46: #{factorized_reduce.1} parent=42 // pred_region
        // Predicated region
        $region48: #{factorized_reduce.1} parent=46 // pred_check
          _
        $region49: #{factorized_reduce.1} parent=46 // pred_check_branch
          %112 = sbr.rel (0) target = $region51
        $region50: #{factorized_reduce.1} parent=46 // pred_region
          // Predicated region
          $region63: #{factorized_reduce.1} parent=50 // pred_check
            _
          $region64: #{factorized_reduce.1} parent=50 // pred_check_branch
            %157 = sbr.rel (0) target = $region66
          $region65: #{factorized_reduce.1} parent=50 // pred_region
            loop: start=0, step=1, limit=1
            $region67: #{factorized_reduce.1} parent=65 // loop_pre_header
              _
            $region68: #{factorized_reduce.1} parent=65 // loop_header
              %s159 = sphi 0, %s163
              %p160 = scmp.ge.s32.totalorder %s159, 1
              %s164 = sphi %s108, %s108
              %s165 = sphi [#allocation3], [#allocation3]
            $region69: #{factorized_reduce.1} parent=65 // loop_header_branch
              %162 = sbr.rel (%p160) target = $region73
            $region70: #{factorized_reduce.1} parent=65 // loop_body
              %v166 = vld [vmem:[%s164] sm:$0xff]
              %167 = vst [vmem:[%s165] sm:$0xff] %v166
              %v168 = vld [vmem:[%s164 + $0x10] sm:$0xff]
              %169 = vst [vmem:[%s165 + $0x8] sm:$0xff] %v168
              %v170 = vld [vmem:[%s164 + $0x20] sm:$0xff]
              %171 = vst [vmem:[%s165 + $0x10] sm:$0xff] %v170
              %v172 = vld [vmem:[%s164 + $0x30] sm:$0xff]
              %173 = vst [vmem:[%s165 + $0x18] sm:$0xff] %v172
              %v174 = vld [vmem:[%s164 + $0x40] sm:$0xff]
              %175 = vst [vmem:[%s165 + $0x20] sm:$0xff] %v174
              %v176 = vld [vmem:[%s164 + $0x50] sm:$0xff]
              %177 = vst [vmem:[%s165 + $0x28] sm:$0xff] %v176
              %v178 = vld [vmem:[%s164 + $0x60] sm:$0xff]
              %179 = vst [vmem:[%s165 + $0x30] sm:$0xff] %v178
              %v180 = vld [vmem:[%s164 + $0x70] sm:$0xff]
              %181 = vst [vmem:[%s165 + $0x38] sm:$0xff] %v180
              %v182 = vld [vmem:[%s164 + $0x80] sm:$0xff]
              %183 = vst [vmem:[%s165 + $0x40] sm:$0xff] %v182
              %v184 = vld [vmem:[%s164 + $0x90] sm:$0xff]
              %185 = vst [vmem:[%s165 + $0x48] sm:$0xff] %v184
              %v186 = vld [vmem:[%s164 + $0xa0] sm:$0xff]
              %187 = vst [vmem:[%s165 + $0x50] sm:$0xff] %v186
              %v188 = vld [vmem:[%s164 + $0xb0] sm:$0xff]
              %189 = vst [vmem:[%s165 + $0x58] sm:$0xff] %v188
              %v190 = vld [vmem:[%s164 + $0xc0] sm:$0xff]
              %191 = vst [vmem:[%s165 + $0x60] sm:$0xff] %v190
              %v192 = vld [vmem:[%s164 + $0xd0] sm:$0xff]
              %193 = vst [vmem:[%s165 + $0x68] sm:$0xff] %v192
              %v194 = vld [vmem:[%s164 + $0xe0] sm:$0xff]
              %195 = vst [vmem:[%s165 + $0x70] sm:$0xff] %v194
              %v196 = vld [vmem:[%s164 + $0xf0] sm:$0xff]
              %197 = vst [vmem:[%s165 + $0x78] sm:$0xff] %v196
            $region71: #{factorized_reduce.1} parent=65 // loop_footer
              %s163 = sadd.s32 1, %s159
            $region72: #{factorized_reduce.1} parent=65 // loop_footer_branch
              %158 = sbr.rel target = $region68
            $region73: #{factorized_reduce.1} parent=65 // loop_exit
              _
          $region66: #{factorized_reduce.1} parent=50 // pred_fallthru
            _
          // Predicated region
          $region74: #{factorized_reduce.1} parent=50 // pred_check
            _
          $region75: #{factorized_reduce.1} parent=50 // pred_check_branch
            %199 = sbr.rel target = $region77
          $region76: #{factorized_reduce.1} parent=50 // pred_region
            _
          $region77: #{factorized_reduce.1} parent=50 // pred_fallthru
            _
        $region51: #{factorized_reduce.1} parent=46 // pred_fallthru
          _
        // Predicated region
        $region52: #{factorized_reduce.1} parent=46 // pred_check
          _
        $region53: #{factorized_reduce.1} parent=46 // pred_check_branch
          %114 = sbr.rel target = $region55
        $region54: #{factorized_reduce.1} parent=46 // pred_region
          loop: start=0, step=1, limit=1
          $region56: #{factorized_reduce.1} parent=54 // loop_pre_header
            _
          $region57: #{factorized_reduce.1} parent=54 // loop_header
            %s117 = sphi 0, %s121
            %p118 = scmp.ge.s32.totalorder %s117, 1
            %s122 = sphi %s108, %s108
            %s123 = sphi [#allocation3], [#allocation3]
          $region58: #{factorized_reduce.1} parent=54 // loop_header_branch
            %120 = sbr.rel (%p118) target = $region62
          $region59: #{factorized_reduce.1} parent=54 // loop_body
            %v124 = vld [vmem:[%s122] sm:$0xff]
            %125 = vst [vmem:[%s123] sm:$0xff] %v124
            %v126 = vld [vmem:[%s122 + $0x10] sm:$0xff]
            %127 = vst [vmem:[%s123 + $0x8] sm:$0xff] %v126
            %v128 = vld [vmem:[%s122 + $0x20] sm:$0xff]
            %129 = vst [vmem:[%s123 + $0x10] sm:$0xff] %v128
            %v130 = vld [vmem:[%s122 + $0x30] sm:$0xff]
            %131 = vst [vmem:[%s123 + $0x18] sm:$0xff] %v130
            %v132 = vld [vmem:[%s122 + $0x40] sm:$0xff]
            %133 = vst [vmem:[%s123 + $0x20] sm:$0xff] %v132
            %v134 = vld [vmem:[%s122 + $0x50] sm:$0xff]
            %135 = vst [vmem:[%s123 + $0x28] sm:$0xff] %v134
            %v136 = vld [vmem:[%s122 + $0x60] sm:$0xff]
            %137 = vst [vmem:[%s123 + $0x30] sm:$0xff] %v136
            %v138 = vld [vmem:[%s122 + $0x70] sm:$0xff]
            %139 = vst [vmem:[%s123 + $0x38] sm:$0xff] %v138
            %v140 = vld [vmem:[%s122 + $0x80] sm:$0xff]
            %141 = vst [vmem:[%s123 + $0x40] sm:$0xff] %v140
            %v142 = vld [vmem:[%s122 + $0x90] sm:$0xff]
            %143 = vst [vmem:[%s123 + $0x48] sm:$0xff] %v142
            %v144 = vld [vmem:[%s122 + $0xa0] sm:$0xff]
            %145 = vst [vmem:[%s123 + $0x50] sm:$0xff] %v144
            %v146 = vld [vmem:[%s122 + $0xb0] sm:$0xff]
            %147 = vst [vmem:[%s123 + $0x58] sm:$0xff] %v146
            %v148 = vld [vmem:[%s122 + $0xc0] sm:$0xff]
            %149 = vst [vmem:[%s123 + $0x60] sm:$0xff] %v148
            %v150 = vld [vmem:[%s122 + $0xd0] sm:$0xff]
            %151 = vst [vmem:[%s123 + $0x68] sm:$0xff] %v150
            %v152 = vld [vmem:[%s122 + $0xe0] sm:$0xff]
            %153 = vst [vmem:[%s123 + $0x70] sm:$0xff] %v152
            %v154 = vld [vmem:[%s122 + $0xf0] sm:$0xff]
            %155 = vst [vmem:[%s123 + $0x78] sm:$0xff] %v154
          $region60: #{factorized_reduce.1} parent=54 // loop_footer
            %s121 = sadd.s32 1, %s117
          $region61: #{factorized_reduce.1} parent=54 // loop_footer_branch
            %116 = sbr.rel target = $region57
          $region62: #{factorized_reduce.1} parent=54 // loop_exit
            _
        $region55: #{factorized_reduce.1} parent=46 // pred_fallthru
          _
      $region47: #{factorized_reduce.1} parent=42 // pred_fallthru
        _
      %200 = vnop
    $region43: #{factorized_reduce.1} parent=1 // pred_fallthru
      _
    // Predicated region
    $region78: #{factorized_reduce.1} parent=1 // pred_check
      _
    $region79: #{factorized_reduce.1} parent=1 // pred_check_branch
      %202 = sbr.rel (0) target = $region81
    $region80: #{factorized_reduce.1} parent=1 // pred_region
      _
    $region81: #{factorized_reduce.1} parent=1 // pred_fallthru
      _
    // Predicated region
    $region82: #{factorized_reduce.1} parent=1 // pred_check
      _
    $region83: #{factorized_reduce.1} parent=1 // pred_check_branch
      %204 = sbr.rel (0) target = $region85
    $region84: #{factorized_reduce.1} parent=1 // pred_region
      _
    $region85: #{factorized_reduce.1} parent=1 // pred_fallthru
      _
    // Predicated region
    $region86: #{factorized_reduce.1} parent=1 // pred_check
      _
    $region87: #{factorized_reduce.1} parent=1 // pred_check_branch
      %206 = sbr.rel (0) target = $region89
    $region88: #{factorized_reduce.1} parent=1 // pred_region
      _
    $region89: #{factorized_reduce.1} parent=1 // pred_fallthru
      _
    // Predicated region
    $region90: #{factorized_reduce.1} parent=1 // pred_check
      _
    $region91: #{factorized_reduce.1} parent=1 // pred_check_branch
      %208 = sbr.rel (0) target = $region93
    $region92: #{factorized_reduce.1} parent=1 // pred_region
      _
    $region93: #{factorized_reduce.1} parent=1 // pred_fallthru
      _
    // Predicated region
    $region94: #{factorized_reduce.1} parent=1 // pred_check
      _
    $region95: #{factorized_reduce.1} parent=1 // pred_check_branch
      %210 = sbr.rel (0) target = $region97
    $region96: #{factorized_reduce.1} parent=1 // pred_region
      _
    $region97: #{factorized_reduce.1} parent=1 // pred_fallthru
      _
    // Predicated region
    $region98: #{factorized_reduce.1} parent=1 // pred_check
      _
    $region99: #{factorized_reduce.1} parent=1 // pred_check_branch
      %212 = sbr.rel (0) target = $region101
    $region100: #{factorized_reduce.1} parent=1 // pred_region
      _
    $region101: #{factorized_reduce.1} parent=1 // pred_fallthru
      _
    // Predicated region
    $region102: #{factorized_reduce.1} parent=1 // pred_check
      _
    $region103: #{factorized_reduce.1} parent=1 // pred_check_branch
      %214 = sbr.rel (0) target = $region105
    $region104: #{factorized_reduce.1} parent=1 // pred_region
      _
    $region105: #{factorized_reduce.1} parent=1 // pred_fallthru
      _
    %v216 = vld [vmem:[%s3] sm:$0x1]
    %v217 = vld [vmem:[#allocation2] sm:$0xff]
    %v218 = vld [vmem:[#allocation2 + $0x8] sm:$0xff]
    %v219 = vld [vmem:[#allocation2 + $0x10] sm:$0xff]
    %v220 = vld [vmem:[#allocation2 + $0x18] sm:$0xff]
    %v221 = vld [vmem:[#allocation2 + $0x20] sm:$0xff]
    %v222 = vld [vmem:[#allocation2 + $0x28] sm:$0xff]
    %v223 = vld [vmem:[#allocation2 + $0x30] sm:$0xff]
    %v224 = vld [vmem:[#allocation2 + $0x38] sm:$0xff]
    %v225 = vld [vmem:[#allocation2 + $0x40] sm:$0xff]
    %v226 = vld [vmem:[#allocation2 + $0x48] sm:$0xff]
    %v227 = vld [vmem:[#allocation2 + $0x50] sm:$0xff]
    %v228 = vld [vmem:[#allocation2 + $0x58] sm:$0xff]
    %v229 = vld [vmem:[#allocation2 + $0x60] sm:$0xff]
    %v230 = vld [vmem:[#allocation2 + $0x68] sm:$0xff]
    %v231 = vld [vmem:[#allocation2 + $0x70] sm:$0xff]
    %v232 = vld [vmem:[#allocation2 + $0x78] sm:$0xff]
    %v234 = vlaneseq
    %v235 = vshrl.u32 %v234, 7
    %v236 = vsub.s32 0, %v235
    %v237 = vrot.slane %v216, %v236
    %v239 = vsub.f32 %v217, %v237
    %v240 = vsub.f32 %v218, %v237
    %v241 = vsub.f32 %v219, %v237
    %v242 = vsub.f32 %v220, %v237
    %v243 = vsub.f32 %v221, %v237
    %v244 = vsub.f32 %v222, %v237
    %v245 = vsub.f32 %v223, %v237
    %v246 = vsub.f32 %v224, %v237
    %v247 = vsub.f32 %v225, %v237
    %v248 = vsub.f32 %v226, %v237
    %v249 = vsub.f32 %v227, %v237
    %v250 = vsub.f32 %v228, %v237
    %v251 = vsub.f32 %v229, %v237
    %v252 = vsub.f32 %v230, %v237
    %v253 = vsub.f32 %v231, %v237
    %v254 = vsub.f32 %v232, %v237
    %vm255 = vcmp.gt.f32.partialorder %v239, 0.0
    %vm256 = vcmp.gt.f32.partialorder %v240, 0.0
    %vm257 = vcmp.gt.f32.partialorder %v241, 0.0
    %vm258 = vcmp.gt.f32.partialorder %v242, 0.0
    %vm259 = vcmp.gt.f32.partialorder %v243, 0.0
    %vm260 = vcmp.gt.f32.partialorder %v244, 0.0
    %vm261 = vcmp.gt.f32.partialorder %v245, 0.0
    %vm262 = vcmp.gt.f32.partialorder %v246, 0.0
    %vm263 = vcmp.gt.f32.partialorder %v247, 0.0
    %vm264 = vcmp.gt.f32.partialorder %v248, 0.0
    %vm265 = vcmp.gt.f32.partialorder %v249, 0.0
    %vm266 = vcmp.gt.f32.partialorder %v250, 0.0
    %vm267 = vcmp.gt.f32.partialorder %v251, 0.0
    %vm268 = vcmp.gt.f32.partialorder %v252, 0.0
    %vm269 = vcmp.gt.f32.partialorder %v253, 0.0
    %vm270 = vcmp.gt.f32.partialorder %v254, 0.0
    %vm271 = vcmp.lt.f32.partialorder %v239, 0.0
    %vm272 = vcmp.lt.f32.partialorder %v240, 0.0
    %vm273 = vcmp.lt.f32.partialorder %v241, 0.0
    %vm274 = vcmp.lt.f32.partialorder %v242, 0.0
    %vm275 = vcmp.lt.f32.partialorder %v243, 0.0
    %vm276 = vcmp.lt.f32.partialorder %v244, 0.0
    %vm277 = vcmp.lt.f32.partialorder %v245, 0.0
    %vm278 = vcmp.lt.f32.partialorder %v246, 0.0
    %vm279 = vcmp.lt.f32.partialorder %v247, 0.0
    %vm280 = vcmp.lt.f32.partialorder %v248, 0.0
    %vm281 = vcmp.lt.f32.partialorder %v249, 0.0
    %vm282 = vcmp.lt.f32.partialorder %v250, 0.0
    %vm283 = vcmp.lt.f32.partialorder %v251, 0.0
    %vm284 = vcmp.lt.f32.partialorder %v252, 0.0
    %vm285 = vcmp.lt.f32.partialorder %v253, 0.0
    %vm286 = vcmp.lt.f32.partialorder %v254, 0.0
    %v287 = vsel %vm271, -1.0, 0.0
    %v288 = vsel %vm272, -1.0, 0.0
    %v289 = vsel %vm273, -1.0, 0.0
    %v290 = vsel %vm274, -1.0, 0.0
    %v291 = vsel %vm275, -1.0, 0.0
    %v292 = vsel %vm276, -1.0, 0.0
    %v293 = vsel %vm277, -1.0, 0.0
    %v294 = vsel %vm278, -1.0, 0.0
    %v295 = vsel %vm279, -1.0, 0.0
    %v296 = vsel %vm280, -1.0, 0.0
    %v297 = vsel %vm281, -1.0, 0.0
    %v298 = vsel %vm282, -1.0, 0.0
    %v299 = vsel %vm283, -1.0, 0.0
    %v300 = vsel %vm284, -1.0, 0.0
    %v301 = vsel %vm285, -1.0, 0.0
    %v302 = vsel %vm286, -1.0, 0.0
    %v303 = vsel %vm255, 1.0, %v287
    %v304 = vsel %vm256, 1.0, %v288
    %v305 = vsel %vm257, 1.0, %v289
    %v306 = vsel %vm258, 1.0, %v290
    %v307 = vsel %vm259, 1.0, %v291
    %v308 = vsel %vm260, 1.0, %v292
    %v309 = vsel %vm261, 1.0, %v293
    %v310 = vsel %vm262, 1.0, %v294
    %v311 = vsel %vm263, 1.0, %v295
    %v312 = vsel %vm264, 1.0, %v296
    %v313 = vsel %vm265, 1.0, %v297
    %v314 = vsel %vm266, 1.0, %v298
    %v315 = vsel %vm267, 1.0, %v299
    %v316 = vsel %vm268, 1.0, %v300
    %v317 = vsel %vm269, 1.0, %v301
    %v318 = vsel %vm270, 1.0, %v302
    %v319 = vld [vmem:[#allocation3] sm:$0xff]
    %v320 = vld [vmem:[#allocation3 + $0x8] sm:$0xff]
    %v321 = vld [vmem:[#allocation3 + $0x10] sm:$0xff]
    %v322 = vld [vmem:[#allocation3 + $0x18] sm:$0xff]
    %v323 = vld [vmem:[#allocation3 + $0x20] sm:$0xff]
    %v324 = vld [vmem:[#allocation3 + $0x28] sm:$0xff]
    %v325 = vld [vmem:[#allocation3 + $0x30] sm:$0xff]
    %v326 = vld [vmem:[#allocation3 + $0x38] sm:$0xff]
    %v327 = vld [vmem:[#allocation3 + $0x40] sm:$0xff]
    %v328 = vld [vmem:[#allocation3 + $0x48] sm:$0xff]
    %v329 = vld [vmem:[#allocation3 + $0x50] sm:$0xff]
    %v330 = vld [vmem:[#allocation3 + $0x58] sm:$0xff]
    %v331 = vld [vmem:[#allocation3 + $0x60] sm:$0xff]
    %v332 = vld [vmem:[#allocation3 + $0x68] sm:$0xff]
    %v333 = vld [vmem:[#allocation3 + $0x70] sm:$0xff]
    %v334 = vld [vmem:[#allocation3 + $0x78] sm:$0xff]
    %v335 = vsub.f32 %v319, %v237
    %v336 = vsub.f32 %v320, %v237
    %v337 = vsub.f32 %v321, %v237
    %v338 = vsub.f32 %v322, %v237
    %v339 = vsub.f32 %v323, %v237
    %v340 = vsub.f32 %v324, %v237
    %v341 = vsub.f32 %v325, %v237
    %v342 = vsub.f32 %v326, %v237
    %v343 = vsub.f32 %v327, %v237
    %v344 = vsub.f32 %v328, %v237
    %v345 = vsub.f32 %v329, %v237
    %v346 = vsub.f32 %v330, %v237
    %v347 = vsub.f32 %v331, %v237
    %v348 = vsub.f32 %v332, %v237
    %v349 = vsub.f32 %v333, %v237
    %v350 = vsub.f32 %v334, %v237
    %vm351 = vcmp.gt.f32.partialorder %v335, 0.0
    %vm352 = vcmp.gt.f32.partialorder %v336, 0.0
    %vm353 = vcmp.gt.f32.partialorder %v337, 0.0
    %vm354 = vcmp.gt.f32.partialorder %v338, 0.0
    %vm355 = vcmp.gt.f32.partialorder %v339, 0.0
    %vm356 = vcmp.gt.f32.partialorder %v340, 0.0
    %vm357 = vcmp.gt.f32.partialorder %v341, 0.0
    %vm358 = vcmp.gt.f32.partialorder %v342, 0.0
    %vm359 = vcmp.gt.f32.partialorder %v343, 0.0
    %vm360 = vcmp.gt.f32.partialorder %v344, 0.0
    %vm361 = vcmp.gt.f32.partialorder %v345, 0.0
    %vm362 = vcmp.gt.f32.partialorder %v346, 0.0
    %vm363 = vcmp.gt.f32.partialorder %v347, 0.0
    %vm364 = vcmp.gt.f32.partialorder %v348, 0.0
    %vm365 = vcmp.gt.f32.partialorder %v349, 0.0
    %vm366 = vcmp.gt.f32.partialorder %v350, 0.0
    %vm367 = vcmp.lt.f32.partialorder %v335, 0.0
    %vm368 = vcmp.lt.f32.partialorder %v336, 0.0
    %vm369 = vcmp.lt.f32.partialorder %v337, 0.0
    %vm370 = vcmp.lt.f32.partialorder %v338, 0.0
    %vm371 = vcmp.lt.f32.partialorder %v339, 0.0
    %vm372 = vcmp.lt.f32.partialorder %v340, 0.0
    %vm373 = vcmp.lt.f32.partialorder %v341, 0.0
    %vm374 = vcmp.lt.f32.partialorder %v342, 0.0
    %vm375 = vcmp.lt.f32.partialorder %v343, 0.0
    %vm376 = vcmp.lt.f32.partialorder %v344, 0.0
    %vm377 = vcmp.lt.f32.partialorder %v345, 0.0
    %vm378 = vcmp.lt.f32.partialorder %v346, 0.0
    %vm379 = vcmp.lt.f32.partialorder %v347, 0.0
    %vm380 = vcmp.lt.f32.partialorder %v348, 0.0
    %vm381 = vcmp.lt.f32.partialorder %v349, 0.0
    %vm382 = vcmp.lt.f32.partialorder %v350, 0.0
    %v383 = vsel %vm367, -1.0, 0.0
    %v384 = vsel %vm368, -1.0, 0.0
    %v385 = vsel %vm369, -1.0, 0.0
    %v386 = vsel %vm370, -1.0, 0.0
    %v387 = vsel %vm371, -1.0, 0.0
    %v388 = vsel %vm372, -1.0, 0.0
    %v389 = vsel %vm373, -1.0, 0.0
    %v390 = vsel %vm374, -1.0, 0.0
    %v391 = vsel %vm375, -1.0, 0.0
    %v392 = vsel %vm376, -1.0, 0.0
    %v393 = vsel %vm377, -1.0, 0.0
    %v394 = vsel %vm378, -1.0, 0.0
    %v395 = vsel %vm379, -1.0, 0.0
    %v396 = vsel %vm380, -1.0, 0.0
    %v397 = vsel %vm381, -1.0, 0.0
    %v398 = vsel %vm382, -1.0, 0.0
    %v399 = vsel %vm351, 1.0, %v383
    %v400 = vsel %vm352, 1.0, %v384
    %v401 = vsel %vm353, 1.0, %v385
    %v402 = vsel %vm354, 1.0, %v386
    %v403 = vsel %vm355, 1.0, %v387
    %v404 = vsel %vm356, 1.0, %v388
    %v405 = vsel %vm357, 1.0, %v389
    %v406 = vsel %vm358, 1.0, %v390
    %v407 = vsel %vm359, 1.0, %v391
    %v408 = vsel %vm360, 1.0, %v392
    %v409 = vsel %vm361, 1.0, %v393
    %v410 = vsel %vm362, 1.0, %v394
    %v411 = vsel %vm363, 1.0, %v395
    %v412 = vsel %vm364, 1.0, %v396
    %v413 = vsel %vm365, 1.0, %v397
    %v414 = vsel %vm366, 1.0, %v398
    %431 = vrot.lane.b32.xlu0 %v399, 8
    %v432 = vpop.permute.xlu0 %431
    %433 = vrot.lane.b32.xlu0 %v400, 8
    %v434 = vpop.permute.xlu0 %433
    %435 = vrot.lane.b32.xlu0 %v401, 8
    %v436 = vpop.permute.xlu0 %435
    %437 = vrot.lane.b32.xlu0 %v402, 8
    %v438 = vpop.permute.xlu0 %437
    %439 = vrot.lane.b32.xlu0 %v403, 8
    %v440 = vpop.permute.xlu0 %439
    %441 = vrot.lane.b32.xlu0 %v404, 8
    %v442 = vpop.permute.xlu0 %441
    %443 = vrot.lane.b32.xlu0 %v405, 8
    %v444 = vpop.permute.xlu0 %443
    %445 = vrot.lane.b32.xlu0 %v406, 8
    %v446 = vpop.permute.xlu0 %445
    %447 = vrot.lane.b32.xlu0 %v407, 8
    %v448 = vpop.permute.xlu0 %447
    %449 = vrot.lane.b32.xlu0 %v408, 8
    %v450 = vpop.permute.xlu0 %449
    %451 = vrot.lane.b32.xlu0 %v409, 8
    %v452 = vpop.permute.xlu0 %451
    %453 = vrot.lane.b32.xlu0 %v410, 8
    %v454 = vpop.permute.xlu0 %453
    %455 = vrot.lane.b32.xlu0 %v411, 8
    %v456 = vpop.permute.xlu0 %455
    %457 = vrot.lane.b32.xlu0 %v412, 8
    %v458 = vpop.permute.xlu0 %457
    %459 = vrot.lane.b32.xlu0 %v413, 8
    %v460 = vpop.permute.xlu0 %459
    %461 = vrot.lane.b32.xlu0 %v414, 8
    %v462 = vpop.permute.xlu0 %461
    %vm479 = vcmask 64512
    %v480 = vsel %vm479, %v303, %v432
    %v481 = vsel %vm479, %v304, %v434
    %v482 = vsel %vm479, %v305, %v436
    %v483 = vsel %vm479, %v306, %v438
    %v484 = vsel %vm479, %v307, %v440
    %v485 = vsel %vm479, %v308, %v442
    %v486 = vsel %vm479, %v309, %v444
    %v487 = vsel %vm479, %v310, %v446
    %v488 = vsel %vm479, %v311, %v448
    %v489 = vsel %vm479, %v312, %v450
    %v490 = vsel %vm479, %v313, %v452
    %v491 = vsel %vm479, %v314, %v454
    %v492 = vsel %vm479, %v315, %v456
    %v493 = vsel %vm479, %v316, %v458
    %v494 = vsel %vm479, %v317, %v460
    %v495 = vsel %vm479, %v318, %v462
    %v496 = vpack.c.bf16 %v481, %v480
    %v497 = vpack.c.bf16 %v483, %v482
    %v498 = vpack.c.bf16 %v485, %v484
    %v499 = vpack.c.bf16 %v487, %v486
    %v500 = vpack.c.bf16 %v489, %v488
    %v501 = vpack.c.bf16 %v491, %v490
    %v502 = vpack.c.bf16 %v493, %v492
    %v503 = vpack.c.bf16 %v495, %v494
    %v504 = vld [vmem:[%s2] sm:$0xf]
    %v505 = vld [vmem:[%s2 + $0x4] sm:$0xf]
    %v508 = vunpack.c.l.b16 %v504
    %v509 = vunpack.c.l.b16 %v505
    %v510 = vpack.c.b16 %v509, %v508
    %vm512 = vcmask 130048
    %v514 = vsel %vm512, %v496, 0
    %v517 = vsel %vm512, %v497, 0
    %v520 = vsel %vm512, %v498, 0
    %v523 = vsel %vm512, %v499, 0
    %v526 = vsel %vm512, %v500, 0
    %v529 = vsel %vm512, %v501, 0
    %v532 = vsel %vm512, %v502, 0
    %v535 = vsel %vm512, %v503, 0
    %537 = vmatprep.subr.bf16.mxu0 0
    %538 = vmatpush1.bf16.msra.mxu0 %v510
    %539 = vmatprep.subr.bf16.mxu0 0
    %540 = vmatpush1.bf16.msra.mxu0 0
    %541 = vmatprep.subr.bf16.mxu0 0
    %542 = vmatpush1.bf16.msra.mxu0 0
    %543 = vmatprep.subr.bf16.mxu0 0
    %544 = vmatpush1.bf16.msra.mxu0 0
    %545 = vmatprep.subr.bf16.mxu0 0
    %546 = vmatpush1.bf16.msra.mxu0 0
    %547 = vmatprep.subr.bf16.mxu0 0
    %548 = vmatpush1.bf16.msra.mxu0 0
    %549 = vmatprep.subr.bf16.mxu0 0
    %550 = vmatpush1.bf16.msra.mxu0 0
    %551 = vmatprep.subr.bf16.mxu0 0
    %552 = vmatpush1.bf16.msra.mxu0 0
    %553 = vmatprep.subr.bf16.mxu0 0
    %554 = vmatpush1.bf16.msra.mxu0 0
    %555 = vmatprep.subr.bf16.mxu0 0
    %556 = vmatpush1.bf16.msra.mxu0 0
    %557 = vmatprep.subr.bf16.mxu0 0
    %558 = vmatpush1.bf16.msra.mxu0 0
    %559 = vmatprep.subr.bf16.mxu0 0
    %560 = vmatpush1.bf16.msra.mxu0 0
    %561 = vmatprep.subr.bf16.mxu0 0
    %562 = vmatpush1.bf16.msra.mxu0 0
    %563 = vmatprep.subr.bf16.mxu0 0
    %564 = vmatpush1.bf16.msra.mxu0 0
    %565 = vmatprep.subr.bf16.mxu0 0
    %566 = vmatpush1.bf16.msra.mxu0 0
    %567 = vmatprep.subr.bf16.mxu0 0
    %568 = vmatpush1.bf16.msra.mxu0 0
    %569 = vmatprep.mubr.bf16.mxu0 0
    %570 = vmatmul.mubr.bf16.gmra.mrb[0].mxu0 %v514
    %v571 = vpop.f32.mrb[0].mxu0
    %v572 = vadd.f32 0.0, %v571
    %v573 = vpop.f32.mrb[0].mxu0
    %v574 = vpop.f32.mrb[0].mxu0
    %v575 = vadd.f32 0.0, %v574
    %v576 = vpop.f32.mrb[0].mxu0
    %577 = vmatprep.mubr.bf16.mxu0 0
    %578 = vmatmul.mubr.bf16.gmra.mrb[0].mxu0 %v517
    %v579 = vpop.f32.mrb[0].mxu0
    %v580 = vadd.f32 0.0, %v579
    %v581 = vpop.f32.mrb[0].mxu0
    %v582 = vpop.f32.mrb[0].mxu0
    %v583 = vadd.f32 0.0, %v582
    %v584 = vpop.f32.mrb[0].mxu0
    %585 = vmatprep.mubr.bf16.mxu0 0
    %586 = vmatmul.mubr.bf16.gmra.mrb[0].mxu0 %v520
    %v587 = vpop.f32.mrb[0].mxu0
    %v588 = vadd.f32 0.0, %v587
    %v589 = vpop.f32.mrb[0].mxu0
    %v590 = vpop.f32.mrb[0].mxu0
    %v591 = vadd.f32 0.0, %v590
    %v592 = vpop.f32.mrb[0].mxu0
    %593 = vmatprep.mubr.bf16.mxu0 0
    %594 = vmatmul.mubr.bf16.gmra.mrb[0].mxu0 %v523
    %v595 = vpop.f32.mrb[0].mxu0
    %v596 = vadd.f32 0.0, %v595
    %v597 = vpop.f32.mrb[0].mxu0
    %v598 = vpop.f32.mrb[0].mxu0
    %v599 = vadd.f32 0.0, %v598
    %v600 = vpop.f32.mrb[0].mxu0
    %601 = vmatprep.mubr.bf16.mxu0 0
    %602 = vmatmul.mubr.bf16.gmra.mrb[0].mxu0 %v526
    %v603 = vpop.f32.mrb[0].mxu0
    %v604 = vadd.f32 0.0, %v603
    %v605 = vpop.f32.mrb[0].mxu0
    %v606 = vpop.f32.mrb[0].mxu0
    %v607 = vadd.f32 0.0, %v606
    %v608 = vpop.f32.mrb[0].mxu0
    %609 = vmatprep.mubr.bf16.mxu0 0
    %610 = vmatmul.mubr.bf16.gmra.mrb[0].mxu0 %v529
    %v611 = vpop.f32.mrb[0].mxu0
    %v612 = vadd.f32 0.0, %v611
    %v613 = vpop.f32.mrb[0].mxu0
    %v614 = vpop.f32.mrb[0].mxu0
    %v615 = vadd.f32 0.0, %v614
    %v616 = vpop.f32.mrb[0].mxu0
    %617 = vmatprep.mubr.bf16.mxu0 0
    %618 = vmatmul.mubr.bf16.gmra.mrb[0].mxu0 %v532
    %v619 = vpop.f32.mrb[0].mxu0
    %v620 = vadd.f32 0.0, %v619
    %v621 = vpop.f32.mrb[0].mxu0
    %v622 = vpop.f32.mrb[0].mxu0
    %v623 = vadd.f32 0.0, %v622
    %v624 = vpop.f32.mrb[0].mxu0
    %625 = vmatprep.mubr.bf16.mxu0 0
    %626 = vmatmul.mubr.bf16.gmra.mrb[0].mxu0 %v535
    %v627 = vpop.f32.mrb[0].mxu0
    %v628 = vadd.f32 0.0, %v627
    %v629 = vpop.f32.mrb[0].mxu0
    %v630 = vpop.f32.mrb[0].mxu0
    %v631 = vadd.f32 0.0, %v630
    %v632 = vpop.f32.mrb[0].mxu0
    %633 = vdwg.mxu0
    %v634 = vld [vmem:[%s4] sm:$0x1]
    %v636 = vlaneseq
    %v637 = vshrl.u32 %v636, 7
    %v638 = vsub.s32 0, %v637
    %v639 = vrot.slane %v634, %v638
    %v641 = vmul.f32 %v572, %v639
    %v642 = vmul.f32 %v575, %v639
    %v643 = vmul.f32 %v580, %v639
    %v644 = vmul.f32 %v583, %v639
    %v645 = vmul.f32 %v588, %v639
    %v646 = vmul.f32 %v591, %v639
    %v647 = vmul.f32 %v596, %v639
    %v648 = vmul.f32 %v599, %v639
    %v649 = vmul.f32 %v604, %v639
    %v650 = vmul.f32 %v607, %v639
    %v651 = vmul.f32 %v612, %v639
    %v652 = vmul.f32 %v615, %v639
    %v653 = vmul.f32 %v620, %v639
    %v654 = vmul.f32 %v623, %v639
    %v655 = vmul.f32 %v628, %v639
    %v656 = vmul.f32 %v631, %v639
    %v657 = vld [vmem:[%s5] sm:$0x1]
    %v659 = vlaneseq
    %v660 = vshrl.u32 %v659, 7
    %v661 = vsub.s32 0, %v660
    %v662 = vrot.slane %v657, %v661
    %v664 = vadd.f32 %v641, %v662
    %v665 = vadd.f32 %v642, %v662
    %v666 = vadd.f32 %v643, %v662
    %v667 = vadd.f32 %v644, %v662
    %v668 = vadd.f32 %v645, %v662
    %v669 = vadd.f32 %v646, %v662
    %v670 = vadd.f32 %v647, %v662
    %v671 = vadd.f32 %v648, %v662
    %v672 = vadd.f32 %v649, %v662
    %v673 = vadd.f32 %v650, %v662
    %v674 = vadd.f32 %v651, %v662
    %v675 = vadd.f32 %v652, %v662
    %v676 = vadd.f32 %v653, %v662
    %v677 = vadd.f32 %v654, %v662
    %v678 = vadd.f32 %v655, %v662
    %v679 = vadd.f32 %v656, %v662
    %vm680 = vcmp.gt.f32.partialorder %v664, 0.0
    %vm681 = vcmp.gt.f32.partialorder %v665, 0.0
    %vm682 = vcmp.gt.f32.partialorder %v666, 0.0
    %vm683 = vcmp.gt.f32.partialorder %v667, 0.0
    %vm684 = vcmp.gt.f32.partialorder %v668, 0.0
    %vm685 = vcmp.gt.f32.partialorder %v669, 0.0
    %vm686 = vcmp.gt.f32.partialorder %v670, 0.0
    %vm687 = vcmp.gt.f32.partialorder %v671, 0.0
    %vm688 = vcmp.gt.f32.partialorder %v672, 0.0
    %vm689 = vcmp.gt.f32.partialorder %v673, 0.0
    %vm690 = vcmp.gt.f32.partialorder %v674, 0.0
    %vm691 = vcmp.gt.f32.partialorder %v675, 0.0
    %vm692 = vcmp.gt.f32.partialorder %v676, 0.0
    %vm693 = vcmp.gt.f32.partialorder %v677, 0.0
    %vm694 = vcmp.gt.f32.partialorder %v678, 0.0
    %vm695 = vcmp.gt.f32.partialorder %v679, 0.0
    %v696 = vld [vmem:[%s6] sm:$0x1]
    %v698 = vlaneseq
    %v699 = vshrl.u32 %v698, 7
    %v700 = vsub.s32 0, %v699
    %v701 = vrot.slane %v696, %v700
    %v703 = vmul.f32 %v701, %v664
    %v704 = vmul.f32 %v701, %v665
    %v705 = vmul.f32 %v701, %v666
    %v706 = vmul.f32 %v701, %v667
    %v707 = vmul.f32 %v701, %v668
    %v708 = vmul.f32 %v701, %v669
    %v709 = vmul.f32 %v701, %v670
    %v710 = vmul.f32 %v701, %v671
    %v711 = vmul.f32 %v701, %v672
    %v712 = vmul.f32 %v701, %v673
    %v713 = vmul.f32 %v701, %v674
    %v714 = vmul.f32 %v701, %v675
    %v715 = vmul.f32 %v701, %v676
    %v716 = vmul.f32 %v701, %v677
    %v717 = vmul.f32 %v701, %v678
    %v718 = vmul.f32 %v701, %v679
    %v719 = vsel %vm680, %v664, %v703
    %v720 = vsel %vm681, %v665, %v704
    %v721 = vsel %vm682, %v666, %v705
    %v722 = vsel %vm683, %v667, %v706
    %v723 = vsel %vm684, %v668, %v707
    %v724 = vsel %vm685, %v669, %v708
    %v725 = vsel %vm686, %v670, %v709
    %v726 = vsel %vm687, %v671, %v710
    %v727 = vsel %vm688, %v672, %v711
    %v728 = vsel %vm689, %v673, %v712
    %v729 = vsel %vm690, %v674, %v713
    %v730 = vsel %vm691, %v675, %v714
    %v731 = vsel %vm692, %v676, %v715
    %v732 = vsel %vm693, %v677, %v716
    %v733 = vsel %vm694, %v678, %v717
    %v734 = vsel %vm695, %v679, %v718
    %vm735 = vcmask 31744
    %736 = vst.msk [vmem:[%s7] sm:$0xff] %vm735, %v719
    %737 = vst.msk [vmem:[%s7 + $0x8] sm:$0xff] %vm735, %v720
    %738 = vst.msk [vmem:[%s7 + $0x10] sm:$0xff] %vm735, %v721
    %739 = vst.msk [vmem:[%s7 + $0x18] sm:$0xff] %vm735, %v722
    %740 = vst.msk [vmem:[%s7 + $0x20] sm:$0xff] %vm735, %v723
    %741 = vst.msk [vmem:[%s7 + $0x28] sm:$0xff] %vm735, %v724
    %742 = vst.msk [vmem:[%s7 + $0x30] sm:$0xff] %vm735, %v725
    %743 = vst.msk [vmem:[%s7 + $0x38] sm:$0xff] %vm735, %v726
    %744 = vst.msk [vmem:[%s7 + $0x40] sm:$0xff] %vm735, %v727
    %745 = vst.msk [vmem:[%s7 + $0x48] sm:$0xff] %vm735, %v728
    %746 = vst.msk [vmem:[%s7 + $0x50] sm:$0xff] %vm735, %v729
    %747 = vst.msk [vmem:[%s7 + $0x58] sm:$0xff] %vm735, %v730
    %748 = vst.msk [vmem:[%s7 + $0x60] sm:$0xff] %vm735, %v731
    %749 = vst.msk [vmem:[%s7 + $0x68] sm:$0xff] %vm735, %v732
    %750 = vst.msk [vmem:[%s7 + $0x70] sm:$0xff] %vm735, %v733
    %751 = vst.msk [vmem:[%s7 + $0x78] sm:$0xff] %vm735, %v734
    // Predicated region
    $region106: #{factorized_reduce.1} parent=1 // pred_check
      _
    $region107: #{factorized_reduce.1} parent=1 // pred_check_branch
      %753 = sbr.rel (0) target = $region109
    $region108: #{factorized_reduce.1} parent=1 // pred_region
      _
    $region109: #{factorized_reduce.1} parent=1 // pred_fallthru
      _
    // Predicated region
    $region110: #{factorized_reduce.1} parent=1 // pred_check
      _
    $region111: #{factorized_reduce.1} parent=1 // pred_check_branch
      %755 = sbr.rel (0) target = $region113
    $region112: #{factorized_reduce.1} parent=1 // pred_region
      _
    $region113: #{factorized_reduce.1} parent=1 // pred_fallthru
      _

</llo_original>
